<compile_context>
chip_gen: v5e
topology: v5e:2x2
jax: 0.10.0
libtpu: 0.0.40
codegen_flags: <defaults>
</compile_context>

<pallas_src>
import functools
import math

import jax
import jax.numpy as jnp
import numpy as np
from jax import lax
from jax.experimental import pallas as pl
from jax.experimental.pallas import tpu as pltpu

_LANES = 128
_SUBLANES = 8


def _round_up(x, m):
    return ((x + m - 1) // m) * m


# ----------------------------------------------------------------------------- kernels


def _rmse_sum_kernel(pred_ref, true_ref, acc_ref, *, eps, rows, block_rows,
                     inner_steps, ragged):
    """Accumulate sum(sqrt((pred-true)^2 + eps)) over row-blocks.

    Grid = (num_partitions [parallel], inner_steps [arbitrary]).
    acc_ref is the (1, 8, 128) f32 output block for this partition; it stays resident
    across the inner (reduction) axis and acts as a 1024-wide vector accumulator.
    """
    j = pl.program_id(1)

    @pl.when(j == 0)
    def _init():
        acc_ref[...] = jnp.zeros_like(acc_ref)

    d = pred_ref[...].astype(jnp.float32) - true_ref[...].astype(jnp.float32)
    val = jnp.sqrt(d * d + eps)

    def accumulate(v):
        # (block_rows, 128) -> vreg-granular regroup -> VALU adds down to (8, 128)
        acc_ref[0] = acc_ref[0] + v.reshape(block_rows // _SUBLANES, _SUBLANES,
                                            _LANES).sum(axis=0)

    if ragged:
        b = pl.program_id(0) * inner_steps + j            # global row-block index
        is_full = (b + 1) * block_rows <= rows

        @pl.when(is_full)
        def _full():
            accumulate(val)

        @pl.when(jnp.logical_not(is_full))
        def _boundary():
            # Only the partial / duplicated boundary block pays for the row mask.
            row = lax.broadcasted_iota(jnp.int32, (block_rows, _LANES), 0)
            accumulate(jnp.where(b * block_rows + row < rows, val, 0.0))
    else:
        accumulate(val)


def _rmse_elem_kernel(pred_ref, true_ref, out_ref, *, eps):
    """reduction='none': elementwise sqrt((pred-true)^2 + eps), cast to out dtype."""
    d = pred_ref[...].astype(jnp.float32) - true_ref[...].astype(jnp.float32)
    out_ref[...] = jnp.sqrt(d * d + eps).astype(out_ref.dtype)


# ----------------------------------------------------------------------------- wrapper


def _lane_rows(x, rows):
    """Lane-dense (rows, 128) view. Free reshape when x.size % 128 == 0; otherwise
    zero-pads the flattened tail to a 128 multiple."""
    flat = x.reshape(-1)
    pad = rows * _LANES - flat.shape[0]
    if pad:
        flat = jnp.pad(flat, (0, pad))
    return flat.reshape(rows, _LANES)


def _pick_block_rows(rows, bytes_per_row, block_rows):
    if block_rows is None:
        # ~4 MiB of streamed bytes per grid step across all operands.
        block_rows = max(1, (4 << 20) // max(1, bytes_per_row))
    block_rows = min(block_rows, _round_up(rows, _SUBLANES))
    return max(_SUBLANES, _round_up(block_rows, _SUBLANES))


def rmse_loss(y_pred, y_true, *, reduction="mean", eps=1e-9, block_rows=None,
              num_partitions=2):
    if y_pred.shape != y_true.shape:
        raise ValueError(f"shape mismatch: {y_pred.shape} vs {y_true.shape}")
    orig_shape = y_pred.shape
    n = int(np.prod(orig_shape)) if len(orig_shape) else 1

    rows = max(1, -(-n // _LANES))          # ceil(n / 128)
    pad_elems = rows * _LANES - n
    in_bytes_per_row = _LANES * (y_pred.dtype.itemsize + y_true.dtype.itemsize)

    if reduction in ("mean", "sum"):
        br = _pick_block_rows(rows, in_bytes_per_row, block_rows)
        blocks = -(-rows // br)
        parts = num_partitions if blocks >= num_partitions else 1
        inner = -(-blocks // parts)
        ragged = (rows % br != 0) or (parts * inner != blocks)

        p = _lane_rows(y_pred, rows)
        t = _lane_rows(y_true, rows)

        tile_bytes = br * _LANES * (p.dtype.itemsize + t.dtype.itemsize)
        vmem_limit = int(max(2 * tile_bytes + (4 << 20), 16 << 20))

        def in_map(c, j):
            # clamp so a duplicated tail block (odd block count) never DMAs out of range;
            # its contribution is zeroed by the row mask.
            return (jnp.minimum(c * inner + j, blocks - 1), 0)

        in_spec = pl.BlockSpec((br, _LANES), in_map)
        kernel = functools.partial(_rmse_sum_kernel, eps=float(eps), rows=rows,
                                   block_rows=br, inner_steps=inner, ragged=ragged)

        partials = pl.pallas_call(
            kernel,
            out_shape=jax.ShapeDtypeStruct((parts, _SUBLANES, _LANES), jnp.float32),
            grid=(parts, inner),
            in_specs=[in_spec, in_spec],
            out_specs=pl.BlockSpec((1, _SUBLANES, _LANES), lambda c, j: (c, 0, 0)),
            compiler_params=pltpu.CompilerParams(
                dimension_semantics=("parallel", "arbitrary"),
                vmem_limit_bytes=vmem_limit),
        )(p, t)

        total = jnp.sum(partials)
        if pad_elems:
            # padded tail elements have pred == true == 0 -> each adds exactly sqrt(eps)
            total = total - jnp.float32(pad_elems * math.sqrt(eps))
        if reduction == "mean":
            total = total / n
        return total

    if reduction == "none":
        out_dtype = jnp.promote_types(y_pred.dtype, y_true.dtype)
        bytes_per_row = in_bytes_per_row + _LANES * jnp.dtype(out_dtype).itemsize
        br = _pick_block_rows(rows, bytes_per_row, block_rows)
        blocks = -(-rows // br)

        p = _lane_rows(y_pred, rows)
        t = _lane_rows(y_true, rows)

        tile_bytes = br * _LANES * (p.dtype.itemsize + t.dtype.itemsize +
                                    jnp.dtype(out_dtype).itemsize)
        vmem_limit = int(max(2 * tile_bytes + (4 << 20), 16 << 20))

        spec = pl.BlockSpec((br, _LANES), lambda i: (i, 0))
        out = pl.pallas_call(
            functools.partial(_rmse_elem_kernel, eps=float(eps)),
            out_shape=jax.ShapeDtypeStruct((rows, _LANES), out_dtype),
            grid=(blocks,),
            in_specs=[spec, spec],
            out_specs=spec,
            compiler_params=pltpu.CompilerParams(
                dimension_semantics=("parallel",),
                vmem_limit_bytes=vmem_limit),
        )(p, t)

        if pad_elems:
            return out.reshape(-1)[:n].reshape(orig_shape)
        return out.reshape(orig_shape)

    raise ValueError(f"unknown reduction: {reduction!r}")


def _reference(y_pred, y_true, reduction="mean", eps=1e-9):
    loss = jnp.sqrt((y_pred.astype(jnp.float32) - y_true.astype(jnp.float32)) ** 2 + eps)
    if reduction == "sum":
        return loss.sum()
    if reduction == "mean":
        return loss.mean()
    return loss


if __name__ == "__main__":
    keys = jax.random.split(jax.random.PRNGKey(0), 6)

    # shapes consistent with the module's use in exp028: (batch, 6) regression targets
    B, T = 2, 6
    y_pred = jax.random.normal(keys[0], (B, T), dtype=jnp.float32)
    y_true = jax.random.normal(keys[1], (B, T), dtype=jnp.float32)
    for red in ("mean", "sum", "none"):
        out = jax.block_until_ready(rmse_loss(y_pred, y_true, reduction=red))
        ref = _reference(y_pred, y_true, reduction=red)
        np.testing.assert_allclose(np.asarray(out), np.asarray(ref), rtol=1e-5, atol=1e-6)

    # 128-aligned multi-block case: no padding, no masking, two-partition reduction
    yp = jax.random.normal(keys[2], (16, 1024), dtype=jnp.float32)
    yt = jax.random.normal(keys[3], (16, 1024), dtype=jnp.float32)
    for red in ("mean", "sum"):
        out = jax.block_until_ready(rmse_loss(yp, yt, reduction=red, block_rows=8))
        ref = _reference(yp, yt, reduction=red)
        np.testing.assert_allclose(np.asarray(out), np.asarray(ref), rtol=1e-4, atol=1e-6)

    # non-aligned case: tail padding (analytic sqrt(eps) correction), partial boundary
    # block row-mask, odd block count split across 2 partitions
    yp2 = jax.random.normal(keys[4], (3, 700), dtype=jnp.float32)
    yt2 = jax.random.normal(keys[5], (3, 700), dtype=jnp.float32)
    out = jax.block_until_ready(rmse_loss(yp2, yt2, reduction="mean", block_rows=8))
    ref = _reference(yp2, yt2, reduction="mean")
    np.testing.assert_allclose(np.asarray(out), np.asarray(ref), rtol=1e-4, atol=1e-6)

    # 'none' on a 128-aligned shape: no pad, no post-kernel slice
    out = jax.block_until_ready(rmse_loss(yp2[:, :512], yt2[:, :512], reduction="none"))
    ref = _reference(yp2[:, :512], yt2[:, :512], reduction="none")
    np.testing.assert_allclose(np.asarray(out), np.asarray(ref), rtol=1e-5, atol=1e-6)

    print("KERNEL_OK")
</pallas_src>

<mosaic_0001>
module attributes {stable_mosaic.version = 11 : i64} {
  func.func @_rmse_sum_kernel(%arg0: i32, %arg1: i32, %arg2: memref<8x128xf32, #tpu.memory_space<vmem>>, %arg3: memref<8x128xf32, #tpu.memory_space<vmem>>, %arg4: memref<1x8x128xf32, #tpu.memory_space<vmem>>) attributes {dimension_semantics = [#tpu.dimension_semantics<parallel>, #tpu.dimension_semantics<arbitrary>], iteration_bounds = array<i64: 1, 1>, scalar_prefetch = 0 : i64, scratch_operands = 0 : i64, tpu.core_type = #tpu.core_type<tc>, window_params = [{transform_indices = @transform_0, window_bounds = array<i64: 8, 128>}, {transform_indices = @transform_1, window_bounds = array<i64: 8, 128>}, {transform_indices = @transform_2, window_bounds = array<i64: 1, 8, 128>}]} {
    %c0_i32 = arith.constant 0 : i32
    %0 = arith.cmpi eq, %arg1, %c0_i32 : i32
    %1 = arith.extui %0 : i1 to i32
    %c0_i32_0 = arith.constant 0 : i32
    %2 = arith.cmpi ne, %1, %c0_i32_0 : i32
    scf.if %2 {
      %cst_8 = arith.constant 0.000000e+00 : f32
      %20 = vector.broadcast %cst_8 : f32 to vector<1x8x128xf32>
      %c0_9 = arith.constant 0 : index
      %c0_10 = arith.constant 0 : index
      %c0_11 = arith.constant 0 : index
      %21 = vector.load %arg4[%c0_9, %c0_10, %c0_11] : memref<1x8x128xf32, #tpu.memory_space<vmem>>, vector<1x8x128xf32>
      tpu.vector_store %arg4[%c0_9, %c0_10, %c0_11], %20 {strides = array<i32>} : memref<1x8x128xf32, #tpu.memory_space<vmem>>, vector<1x8x128xf32>,
    } else {
    }
    %c0 = arith.constant 0 : index
    %c0_1 = arith.constant 0 : index
    %3 = vector.load %arg2[%c0, %c0_1] : memref<8x128xf32, #tpu.memory_space<vmem>>, vector<8x128xf32>
    %c0_2 = arith.constant 0 : index
    %c0_3 = arith.constant 0 : index
    %4 = vector.load %arg3[%c0_2, %c0_3] : memref<8x128xf32, #tpu.memory_space<vmem>>, vector<8x128xf32>
    %5 = arith.subf %3, %4 : vector<8x128xf32>
    %6 = arith.mulf %5, %5 : vector<8x128xf32>
    %cst = arith.constant 9.99999971E-10 : f32
    %7 = vector.broadcast %cst : f32 to vector<8x128xf32>
    %8 = arith.addf %6, %7 : vector<8x128xf32>
    %9 = math.sqrt %8 : vector<8x128xf32>
    %c1_i32 = arith.constant 1 : i32
    %10 = arith.muli %arg0, %c1_i32 : i32
    %11 = arith.addi %10, %arg1 : i32
    %c1_i32_4 = arith.constant 1 : i32
    %12 = arith.addi %11, %c1_i32_4 : i32
    %c8_i32 = arith.constant 8 : i32
    %13 = arith.muli %12, %c8_i32 : i32
    %c1_i32_5 = arith.constant 1 : i32
    %14 = arith.cmpi sle, %13, %c1_i32_5 : i32
    %15 = arith.extui %14 : i1 to i32
    %c0_i32_6 = arith.constant 0 : i32
    %16 = arith.cmpi ne, %15, %c0_i32_6 : i32
    scf.if %16 {
      %c0_8 = arith.constant 0 : index
      %c0_9 = arith.constant 0 : index
      %c0_10 = arith.constant 0 : index
      %20 = vector.load %arg4[%c0_8, %c0_9, %c0_10] : memref<1x8x128xf32, #tpu.memory_space<vmem>>, vector<1x8x128xf32>
      %21 = vector.shape_cast %20 : vector<1x8x128xf32> to vector<8x128xf32>
      %22 = vector.shape_cast %9 : vector<8x128xf32> to vector<1x8x128xf32>
      %cst_11 = arith.constant dense<0.000000e+00> : vector<8x128xf32>
      %23 = vector.multi_reduction <add>, %22, %cst_11 [0] : vector<1x8x128xf32> to vector<8x128xf32>
      %24 = arith.addf %21, %23 : vector<8x128xf32>
      %c0_12 = arith.constant 0 : index
      %c0_13 = arith.constant 0 : index
      %c0_14 = arith.constant 0 : index
      %25 = vector.load %arg4[%c0_12, %c0_13, %c0_14] : memref<1x8x128xf32, #tpu.memory_space<vmem>>, vector<1x8x128xf32>
      %26 = vector.shape_cast %25 : vector<1x8x128xf32> to vector<8x128xf32>
      %27 = vector.shape_cast %24 : vector<8x128xf32> to vector<1x8x128xf32>
      tpu.vector_store %arg4[%c0_12, %c0_13, %c0_14], %27 {strides = array<i32>} : memref<1x8x128xf32, #tpu.memory_space<vmem>>, vector<1x8x128xf32>,
    } else {
    }
    %true = arith.constant true
    %17 = arith.xori %14, %true : i1
    %18 = arith.extui %17 : i1 to i32
    %c0_i32_7 = arith.constant 0 : i32
    %19 = arith.cmpi ne, %18, %c0_i32_7 : i32
    scf.if %19 {
      %20 = tpu.iota {dimensions = array<i32: 0>} : vector<8x128xi32>
      %c8_i32_8 = arith.constant 8 : i32
      %21 = arith.muli %11, %c8_i32_8 : i32
      %22 = vector.broadcast %21 : i32 to vector<8x128xi32>
      %23 = arith.addi %22, %20 : vector<8x128xi32>
      %c1_i32_9 = arith.constant 1 : i32
      %24 = vector.broadcast %c1_i32_9 : i32 to vector<8x128xi32>
      %25 = arith.cmpi slt, %23, %24 : vector<8x128xi32>
      %cst_10 = arith.constant 0.000000e+00 : f32
      %26 = vector.broadcast %cst_10 : f32 to vector<8x128xf32>
      %27 = arith.select %25, %9, %26 : vector<8x128xi1>, vector<8x128xf32>
      %c0_11 = arith.constant 0 : index
      %c0_12 = arith.constant 0 : index
      %c0_13 = arith.constant 0 : index
      %28 = vector.load %arg4[%c0_11, %c0_12, %c0_13] : memref<1x8x128xf32, #tpu.memory_space<vmem>>, vector<1x8x128xf32>
      %29 = vector.shape_cast %28 : vector<1x8x128xf32> to vector<8x128xf32>
      %30 = vector.shape_cast %27 : vector<8x128xf32> to vector<1x8x128xf32>
      %cst_14 = arith.constant dense<0.000000e+00> : vector<8x128xf32>
      %31 = vector.multi_reduction <add>, %30, %cst_14 [0] : vector<1x8x128xf32> to vector<8x128xf32>
      %32 = arith.addf %29, %31 : vector<8x128xf32>
      %c0_15 = arith.constant 0 : index
      %c0_16 = arith.constant 0 : index
      %c0_17 = arith.constant 0 : index
      %33 = vector.load %arg4[%c0_15, %c0_16, %c0_17] : memref<1x8x128xf32, #tpu.memory_space<vmem>>, vector<1x8x128xf32>
      %34 = vector.shape_cast %33 : vector<1x8x128xf32> to vector<8x128xf32>
      %35 = vector.shape_cast %32 : vector<8x128xf32> to vector<1x8x128xf32>
      tpu.vector_store %arg4[%c0_15, %c0_16, %c0_17], %35 {strides = array<i32>} : memref<1x8x128xf32, #tpu.memory_space<vmem>>, vector<1x8x128xf32>,
    } else {
    }
    return
  }
  func.func @transform_0(%arg0: i32, %arg1: i32) -> (i32, i32) {
    %c1_i32 = arith.constant 1 : i32
    %0 = arith.muli %arg0, %c1_i32 : i32
    %1 = arith.addi %0, %arg1 : i32
    %c0_i32 = arith.constant 0 : i32
    %2 = arith.minsi %1, %c0_i32 : i32
    %c0_i32_0 = arith.constant 0 : i32
    %c0_i32_1 = arith.constant 0 : i32
    return %2, %c0_i32_0 : i32, i32
  }
  func.func @transform_1(%arg0: i32, %arg1: i32) -> (i32, i32) {
    %c1_i32 = arith.constant 1 : i32
    %0 = arith.muli %arg0, %c1_i32 : i32
    %1 = arith.addi %0, %arg1 : i32
    %c0_i32 = arith.constant 0 : i32
    %2 = arith.minsi %1, %c0_i32 : i32
    %c0_i32_0 = arith.constant 0 : i32
    %c0_i32_1 = arith.constant 0 : i32
    return %2, %c0_i32_0 : i32, i32
  }
  func.func @transform_2(%arg0: i32, %arg1: i32) -> (i32, i32, i32) {
    %c0_i32 = arith.constant 0 : i32
    %c0_i32_0 = arith.constant 0 : i32
    %c0_i32_1 = arith.constant 0 : i32
    return %arg0, %c0_i32, %c0_i32_0 : i32, i32, i32
  }
}

</mosaic_0001>

<llo_original>
// kernel: tpu_custom_call.1
$region0: #{tpu_custom_call.1}
  #allocation0 [shape = 'u32[]', space=smem, size = 0x4, offset = 0x4, fixed_abs, tag = 'smem constant byte address 0x4 - core index']
  #allocation1 [shape = 'u32[72,128]{1,0:T(1,128)}', space=vmem, size = 0x9000, scoped, tag = 'internal scratch']
  %s0 = inlined_call_operand.hbm [shape: f32[1,128], index: 0, kind: input, shape index: {}]
  %s1 = inlined_call_operand.hbm [shape: f32[1,128], index: 1, kind: input, shape index: {}]
  %s2 = inlined_call_operand.hbm [shape: f32[1,8,128], index: 2, kind: output, shape index: {}]
  %s3 = sld [smem:[#allocation0]]
  $region38: #{tpu_custom_call.1} parent=0
    _
  %s5 = ssub.s32 1, %s3
  %s6 = scalar_select 0, %s5, %s3
  $region1: #{tpu_custom_call.1} parent=0
    #allocation2 [shape = 'u8[4096]{0}', space=vmem, size = 0x1000, scoped, tag = 'input window, operand 0, single buffered']
    #allocation3 [shape = 's32[1]{0}', space=sflag, size = 0x4, scoped, tag = 'scoped memory for tpu_custom_call.1']
    #allocation4 [shape = 's32[1]{0}', space=sflag, size = 0x4, scoped, tag = 'scoped memory for tpu_custom_call.1']
    #allocation5 [shape = 'u8[4096]{0}', space=vmem, size = 0x1000, scoped, tag = 'input window, operand 1, single buffered']
    #allocation6 [shape = 's32[1]{0}', space=sflag, size = 0x4, scoped, tag = 'scoped memory for tpu_custom_call.1']
    #allocation7 [shape = 'u8[4096]{0}', space=vmem, size = 0x1000, scoped, tag = 'output window, operand 0, single buffered']
    %7 = vsyncpa [#allocation3], 0
    %8 = vsyncpa [#allocation6], 0
    %9 = vsyncpa [#allocation4], 0
    // Predicated region
    $region2: #{tpu_custom_call.1} parent=1 // pred_check
      _
    $region3: #{tpu_custom_call.1} parent=1 // pred_check_branch
      %11 = sbr.rel (0) target = $region5
    $region4: #{tpu_custom_call.1} parent=1 // pred_region
      %s12 = sadd.s32 0, 0
      %p13 = scmp.lt.s32.totalorder %s12, 0
      %s14 = scalar_select %p13, %s12, 0
      %s15 = smul.u32 8, %s14
      %s16 = ssub.s32 1, %s15
      %s17 = ssub.s32 8, %s16
      %s18 = sshll.u32 %s17, 4
      %19 = vsyncadd [#allocation3], %s18
      %p20 = scmp.ne.s32.totalorder 0, %s16
      %s21 = scalar_lea.hbm %s0, %s15
      %s22 = sshll.u32 %s21, 4
      %s23 = int_to_ptr.hbm [resolvable:$true] %s22
      %s24 = sshll.u32 [#allocation2], 4
      %s25 = int_to_ptr.vmem [resolvable:$true] %s24
      %s26 = sshll.u32 %s16, 4
      %30 = dma.hbm_to_vmem [thread:$0]  (%p20), %s23, %s26, %s25, [#allocation3], 16, 16, 1
    $region5: #{tpu_custom_call.1} parent=1 // pred_fallthru
      _
    // Predicated region
    $region6: #{tpu_custom_call.1} parent=1 // pred_check
      _
    $region7: #{tpu_custom_call.1} parent=1 // pred_check_branch
      %32 = sbr.rel (0) target = $region9
    $region8: #{tpu_custom_call.1} parent=1 // pred_region
      %s33 = sadd.s32 0, 0
      %p34 = scmp.lt.s32.totalorder %s33, 0
      %s35 = scalar_select %p34, %s33, 0
      %s36 = smul.u32 8, %s35
      %s37 = ssub.s32 1, %s36
      %s38 = ssub.s32 8, %s37
      %s39 = sshll.u32 %s38, 4
      %40 = vsyncadd [#allocation6], %s39
      %p41 = scmp.ne.s32.totalorder 0, %s37
      %s42 = scalar_lea.hbm %s1, %s36
      %s43 = sshll.u32 %s42, 4
      %s44 = int_to_ptr.hbm [resolvable:$true] %s43
      %s45 = sshll.u32 [#allocation5], 4
      %s46 = int_to_ptr.vmem [resolvable:$true] %s45
      %s47 = sshll.u32 %s37, 4
      %51 = dma.hbm_to_vmem [thread:$0]  (%p41), %s44, %s47, %s46, [#allocation6], 16, 16, 1
    $region9: #{tpu_custom_call.1} parent=1 // pred_fallthru
      _
    // Predicated region
    $region10: #{tpu_custom_call.1} parent=1 // pred_check
      _
    $region11: #{tpu_custom_call.1} parent=1 // pred_check_branch
      %53 = sbr.rel (0) target = $region13
    $region12: #{tpu_custom_call.1} parent=1 // pred_region
      %55 = dma.done [#allocation3], 128
    $region13: #{tpu_custom_call.1} parent=1 // pred_fallthru
      _
    // Predicated region
    $region14: #{tpu_custom_call.1} parent=1 // pred_check
      _
    $region15: #{tpu_custom_call.1} parent=1 // pred_check_branch
      %57 = sbr.rel (0) target = $region17
    $region16: #{tpu_custom_call.1} parent=1 // pred_region
      %59 = dma.done [#allocation6], 128
    $region17: #{tpu_custom_call.1} parent=1 // pred_fallthru
      _
    %s60 = sadd.s32 0, 0
    %p61 = scmp.lt.s32.totalorder %s60, 0
    %s62 = scalar_select %p61, %s60, 0
    %s63 = smul.u32 8, %s62
    %s64 = ssub.s32 1, %s63
    %s65 = sadd.s32 0, 0
    %p66 = scmp.lt.s32.totalorder %s65, 0
    %s67 = scalar_select %p66, %s65, 0
    %s68 = smul.u32 8, %s67
    %s69 = ssub.s32 1, %s68
    %p70 = scmp.eq.s32.totalorder 0, 0
    // Predicated region
    $region18: #{tpu_custom_call.1} parent=1 // pred_check
      %p71 = pneg %p70
    $region19: #{tpu_custom_call.1} parent=1 // pred_check_branch
      %73 = sbr.rel (%p71) target = $region21
    $region20: #{tpu_custom_call.1} parent=1 // pred_region
      %74 = vst [vmem:[#allocation7] sm:$0xff] 0.0
    $region21: #{tpu_custom_call.1} parent=1 // pred_fallthru
      _
    %v75 = vld [vmem:[#allocation2] sm:$0xff]
    %v76 = vld [vmem:[#allocation5] sm:$0xff]
    %v77 = vsub.f32 %v75, %v76
    %v78 = vmul.f32 %v77, %v77
    %v79 = vadd.f32 %v78, 1e-09
    %v80 = vrsqrt.pop %v79
    %v81 = vmul.f32 %v80, %v79
    %v82 = vmul.f32 %v81, %v80
    %v83 = vmul.f32 0.5, %v82
    %v84 = vsub.f32 1.5, %v83
    %v85 = vmul.f32 %v80, %v84
    %v86 = vmul.f32 %v79, %v85
    %vm87 = vcmp.eq.f32.partialorder %v79, inf
    %v88 = vsel %vm87, %v79, %v86
    %vm89 = vcmp.eq.f32.partialorder %v79, 0.0
    %v90 = vand.u32 %v79, 2147483648
    %v91 = vsel %vm89, %v90, %v88
    %s92 = sadd.s32 0, 0
    %s93 = sadd.s32 %s92, 1
    %s94 = smul.u32 %s93, 8
    %p95 = scmp.le.s32.totalorder %s94, 1
    // Predicated region
    $region22: #{tpu_custom_call.1} parent=1 // pred_check
      %p96 = pneg %p95
    $region23: #{tpu_custom_call.1} parent=1 // pred_check_branch
      %98 = sbr.rel (%p96) target = $region25
    $region24: #{tpu_custom_call.1} parent=1 // pred_region
      %v99 = vld [vmem:[#allocation7] sm:$0xff]
      %v100 = vadd.f32 %v91, 0.0
      %v101 = vadd.f32 %v99, %v100
      %102 = vst [vmem:[#allocation7] sm:$0xff] %v101
    $region25: #{tpu_custom_call.1} parent=1 // pred_fallthru
      _
    %p103 = scmp.gt.s32.totalorder %s94, 1
    // Predicated region
    $region26: #{tpu_custom_call.1} parent=1 // pred_check
      %p104 = pneg %p103
    $region27: #{tpu_custom_call.1} parent=1 // pred_check_branch
      %106 = sbr.rel (%p104) target = $region29
    $region28: #{tpu_custom_call.1} parent=1 // pred_region
      %v107 = vlaneseq
      %v108 = vshrl.u32 %v107, 7
      %s109 = smul.u32 %s92, 8
      %v110 = vstv %s109
      %v111 = vadd.s32 %v110, %v108
      %vm112 = vcmp.lt.s32.totalorder %v111, 1
      %v113 = vsel %vm112, %v91, 0.0
      %v114 = vld [vmem:[#allocation7] sm:$0xff]
      %v115 = vadd.f32 %v113, 0.0
      %v116 = vadd.f32 %v114, %v115
      %117 = vst [vmem:[#allocation7] sm:$0xff] %v116
    $region29: #{tpu_custom_call.1} parent=1 // pred_fallthru
      _
    // Predicated region
    $region30: #{tpu_custom_call.1} parent=1 // pred_check
      _
    $region31: #{tpu_custom_call.1} parent=1 // pred_check_branch
      %119 = sbr.rel (0) target = $region33
    $region32: #{tpu_custom_call.1} parent=1 // pred_region
      %121 = vsyncadd [#allocation4], 0
      %s123 = sshll.u32 [#allocation7], 4
      %s124 = int_to_ptr.vmem [resolvable:$true] %s123
      %s125 = sshll.u32 %s2, 4
      %s126 = int_to_ptr.hbm [resolvable:$true] %s125
      %128 = dma.vmem_to_hbm [thread:$0]  %s124, 128, %s126, [#allocation4]
    $region33: #{tpu_custom_call.1} parent=1 // pred_fallthru
      _
    // Predicated region
    $region34: #{tpu_custom_call.1} parent=1 // pred_check
      _
    $region35: #{tpu_custom_call.1} parent=1 // pred_check_branch
      %130 = sbr.rel (0) target = $region37
    $region36: #{tpu_custom_call.1} parent=1 // pred_region
      %132 = dma.done [#allocation4], 128
    $region37: #{tpu_custom_call.1} parent=1 // pred_fallthru
      _
    %133 = vsyncpa [#allocation3], 1
    %134 = vsyncpa [#allocation6], 1
    %135 = vsyncpa [#allocation4], 1

</llo_original>
